<compile_context>
chip_gen: v5e
topology: v5e:2x2
jax: 0.10.0
libtpu: 0.0.40
codegen_flags: <defaults>
</compile_context>

<pallas_src>
import functools

import jax
import jax.numpy as jnp
from jax.experimental import pallas as pl
from jax.experimental.pallas import tpu as pltpu


def _sum_hw(v):
    """(C, H, W) -> (C, 1) sum over the spatial dims, keeping values >= 2-D."""
    return jnp.sum(jnp.sum(v, axis=-1), axis=-1, keepdims=True)


def _focal_weight(one_minus_pt, gamma):
    g = float(gamma)
    if g == int(g) and 0 <= int(g) <= 4:
        w = jnp.ones_like(one_minus_pt)
        for _ in range(int(g)):            # gamma=2 -> one VPU multiply chain
            w = w * one_minus_pt
        return w
    return one_minus_pt ** g               # non-integer gamma: keep pow


def _enhanced_loss_kernel(out_ref, tgt_ref, stat_ref, pad_ref, *,
                          focal_alpha, gamma, ksz):
    _, C, H, W = out_ref.shape
    x = out_ref[0].astype(jnp.float32)      # (C, H, W) logits
    t = tgt_ref[0].astype(jnp.float32)      # (C, H, W) targets in {0, 1}

    # --- shared transcendentals -------------------------------------------
    # softplus(-x) = -log(sigmoid(x)), stable form; reused for sigmoid, log(p)
    # and log(1-p).
    sp = jnp.maximum(-x, 0.0) + jnp.log(1.0 + jnp.exp(-jnp.abs(x)))
    p = jnp.exp(-sp)                        # sigmoid(x)

    # --- Dice partial sums (per channel) ----------------------------------
    inter_c = _sum_hw(p * t)                # (C, 1)
    psum_c = _sum_hw(p)
    tsum_c = _sum_hw(t)

    # --- Focal partial sums (per channel; collapsed in the JAX epilogue) --
    log_p = jnp.maximum(-sp, -100.0)        # F.binary_cross_entropy clamp
    log_1mp = jnp.maximum(-x - sp, -100.0)
    bce = -(t * log_p + (1.0 - t) * log_1mp)
    # targets are {0,1}; pt = exp(-bce) == p (t=1) / 1-p (t=0) up to exp(-100)
    pt = jnp.where(t > 0.5, p, 1.0 - p)
    f_loss = focal_alpha * _focal_weight(1.0 - pt, gamma) * bce
    focal_c = _sum_hw(f_loss)

    # --- Boundary mask: ksz x ksz box-sum via zero-padded VMEM scratch ----
    thard = (t > 0.5).astype(jnp.float32)
    pad = ksz // 2
    pad_ref[...] = jnp.zeros(pad_ref.shape, jnp.float32)
    pad_ref[:, pad:pad + H, pad:pad + W] = thard
    box = pad_ref[:, 0:H, 0:W]
    for dy in range(ksz):
        for dx in range(ksz):
            if dy == 0 and dx == 0:
                continue
            box = box + pad_ref[:, dy:dy + H, dx:dx + W]
    # boundary = dilated XOR eroded == (box > 0) & (box < ksz*ksz)   (box is
    # an exact small integer in f32, so half-open thresholds are exact)
    bmask = jnp.logical_and(box > 0.5,
                            box < (ksz * ksz - 0.5)).astype(jnp.float32)

    zl = x * bmask
    zt = t * bmask
    # binary_cross_entropy_with_logits, numerically stable form
    bce_b = (jnp.maximum(zl, 0.0) - zl * zt
             + jnp.log(1.0 + jnp.exp(-jnp.abs(zl))))
    bnd_c = _sum_hw(bce_b)

    # --- emit lane-dense partial-stat block --------------------------------
    lane = jax.lax.broadcasted_iota(jnp.int32, (C, 128), 1)
    stats = (jnp.where(lane == 0, inter_c, 0.0)
             + jnp.where(lane == 1, psum_c, 0.0)
             + jnp.where(lane == 2, tsum_c, 0.0)
             + jnp.where(lane == 3, focal_c, 0.0)
             + jnp.where(lane == 4, bnd_c, 0.0))
    stat_ref[0] = stats


def enhanced_combined_loss(output, target, *, alpha=0.5, beta=0.5,
                           smooth=1e-5, focal_alpha=1.0, gamma=2.0,
                           kernel_size=3):
    """EnhancedCombinedLoss.forward(output, target) for NCHW inputs."""
    n, c, h, w = output.shape
    assert target.shape == output.shape

    kernel = functools.partial(
        _enhanced_loss_kernel,
        focal_alpha=float(focal_alpha),
        gamma=float(gamma),
        ksz=int(kernel_size),
    )

    pad = kernel_size // 2
    block_in_bytes = c * h * w * (output.dtype.itemsize + target.dtype.itemsize)
    block_f32 = c * h * w * 4
    # Double-buffered inputs + in-kernel f32 temporaries + padded scratch.
    # Keep within the smallest per-generation budget (v7x: 64 MiB physical,
    # v5e: 16 MiB default scoped limit -> raise it explicitly).
    vmem_limit = int(max(32 << 20,
                         min(56 << 20,
                             2 * block_in_bytes + 12 * block_f32 + (2 << 20))))

    partial = pl.pallas_call(
        kernel,
        out_shape=jax.ShapeDtypeStruct((n, c, 128), jnp.float32),
        grid_spec=pltpu.PrefetchScalarGridSpec(
            num_scalar_prefetch=0,
            grid=(n,),
            in_specs=[
                pl.BlockSpec((1, c, h, w), lambda b: (b, 0, 0, 0)),
                pl.BlockSpec((1, c, h, w), lambda b: (b, 0, 0, 0)),
            ],
            out_specs=pl.BlockSpec((1, c, 128), lambda b: (b, 0, 0)),
            scratch_shapes=[
                pltpu.VMEM((c, h + 2 * pad, w + 2 * pad), jnp.float32),
            ],
        ),
        compiler_params=pltpu.CompilerParams(
            dimension_semantics=("parallel",),
            vmem_limit_bytes=vmem_limit,
        ),
    )(output, target)

    # Tiny pure-JAX epilogue: combine per-batch partial sums into the scalar.
    inter = jnp.sum(partial[:, :, 0], axis=0)     # (C,)
    psum = jnp.sum(partial[:, :, 1], axis=0)
    tsum = jnp.sum(partial[:, :, 2], axis=0)
    fsum = jnp.sum(partial[:, :, 3])
    bsum = jnp.sum(partial[:, :, 4])

    dice_coeff = (2.0 * inter + smooth) / (psum + tsum + smooth)
    dice_loss = jnp.mean(1.0 - dice_coeff)
    total_elems = float(n * c * h * w)
    focal_loss = fsum / total_elems
    boundary_loss = bsum / total_elems
    return alpha * dice_loss + (1.0 - alpha) * focal_loss + beta * boundary_loss


def _reference_enhanced_combined_loss(output, target, alpha=0.5, beta=0.5,
                                      smooth=1e-5, focal_alpha=1.0, gamma=2.0,
                                      kernel_size=3):
    """Pure-JAX reference mirroring the PyTorch EnhancedCombinedLoss."""
    out = output.astype(jnp.float32)
    tgt = target.astype(jnp.float32)
    p = jax.nn.sigmoid(out)

    inter = jnp.sum(p * tgt, axis=(0, 2, 3))
    union = jnp.sum(p, axis=(0, 2, 3)) + jnp.sum(tgt, axis=(0, 2, 3))
    dice = jnp.mean(1.0 - (2.0 * inter + smooth) / (union + smooth))

    log_p = jnp.maximum(jnp.log(p), -100.0)
    log_1mp = jnp.maximum(jnp.log(1.0 - p), -100.0)
    bce = -(tgt * log_p + (1.0 - tgt) * log_1mp)
    pt = jnp.exp(-bce)
    focal = jnp.mean(focal_alpha * (1.0 - pt) ** gamma * bce)

    n, c, h, w = tgt.shape
    pad = kernel_size // 2
    thard = (tgt > 0.5).astype(jnp.float32)
    tp = jnp.pad(thard, ((0, 0), (0, 0), (pad, pad), (pad, pad)))
    box = jnp.zeros_like(thard)
    for dy in range(kernel_size):
        for dx in range(kernel_size):
            box = box + tp[:, :, dy:dy + h, dx:dx + w]
    dilated = box > 0
    eroded = box >= kernel_size * kernel_size
    bmask = jnp.logical_xor(dilated, eroded).astype(jnp.float32)

    zl = out * bmask
    zt = tgt * bmask
    bce_b = jnp.maximum(zl, 0.0) - zl * zt + jnp.log1p(jnp.exp(-jnp.abs(zl)))
    boundary = jnp.mean(bce_b)

    return alpha * dice + (1.0 - alpha) * focal + beta * boundary


if __name__ == "__main__":
    key = jax.random.PRNGKey(0)
    k1, k2 = jax.random.split(key)
    # NCHW inputs; per the module's contract the background class is already
    # removed, so all C channels participate.
    output = jax.random.normal(k1, (2, 4, 16, 16), dtype=jnp.float32)
    target = jax.random.bernoulli(k2, 0.5, (2, 4, 16, 16)).astype(jnp.float32)

    loss = enhanced_combined_loss(output, target)
    jax.block_until_ready(loss)

    ref = _reference_enhanced_combined_loss(output, target)
    assert jnp.allclose(loss, ref, rtol=1e-5, atol=1e-5), (loss, ref)

    print("KERNEL_OK")
</pallas_src>

<mosaic_0001>
module attributes {stable_mosaic.version = 11 : i64} {
  func.func @_enhanced_loss_kernel(%arg0: i32, %arg1: memref<1x4x16x16xf32, #tpu.memory_space<vmem>>, %arg2: memref<1x4x16x16xf32, #tpu.memory_space<vmem>>, %arg3: memref<1x4x128xf32, #tpu.memory_space<vmem>>, %arg4: memref<4x18x18xf32, #tpu.memory_space<vmem>>) attributes {dimension_semantics = [#tpu.dimension_semantics<parallel>], iteration_bounds = array<i64: 2>, scalar_prefetch = 0 : i64, scratch_operands = 1 : i64, tpu.core_type = #tpu.core_type<tc>, window_params = [{transform_indices = @transform_0, window_bounds = array<i64: 1, 4, 16, 16>}, {transform_indices = @transform_1, window_bounds = array<i64: 1, 4, 16, 16>}, {transform_indices = @transform_2, window_bounds = array<i64: 1, 4, 128>}]} {
    %c0 = arith.constant 0 : index
    %c0_0 = arith.constant 0 : index
    %c0_1 = arith.constant 0 : index
    %c0_2 = arith.constant 0 : index
    %0 = vector.load %arg1[%c0, %c0_0, %c0_1, %c0_2] : memref<1x4x16x16xf32, #tpu.memory_space<vmem>>, vector<1x4x16x16xf32>
    %1 = vector.shape_cast %0 : vector<1x4x16x16xf32> to vector<4x16x16xf32>
    %c0_3 = arith.constant 0 : index
    %c0_4 = arith.constant 0 : index
    %c0_5 = arith.constant 0 : index
    %c0_6 = arith.constant 0 : index
    %2 = vector.load %arg2[%c0_3, %c0_4, %c0_5, %c0_6] : memref<1x4x16x16xf32, #tpu.memory_space<vmem>>, vector<1x4x16x16xf32>
    %3 = vector.shape_cast %2 : vector<1x4x16x16xf32> to vector<4x16x16xf32>
    %cst = arith.constant 0.000000e+00 : f32
    %4 = vector.broadcast %cst : f32 to vector<4x16x16xf32>
    %5 = arith.subf %4, %1 : vector<4x16x16xf32>
    %cst_7 = arith.constant 0.000000e+00 : f32
    %6 = vector.broadcast %cst_7 : f32 to vector<4x16x16xf32>
    %7 = arith.maximumf %5, %6 : vector<4x16x16xf32>
    %8 = math.absf %1 : vector<4x16x16xf32>
    %cst_8 = arith.constant 0.000000e+00 : f32
    %9 = vector.broadcast %cst_8 : f32 to vector<4x16x16xf32>
    %10 = arith.subf %9, %8 : vector<4x16x16xf32>
    %11 = math.exp %10 : vector<4x16x16xf32>
    %cst_9 = arith.constant 1.000000e+00 : f32
    %12 = vector.broadcast %cst_9 : f32 to vector<4x16x16xf32>
    %13 = arith.addf %12, %11 : vector<4x16x16xf32>
    %14 = math.log %13 : vector<4x16x16xf32>
    %15 = arith.addf %7, %14 : vector<4x16x16xf32>
    %cst_10 = arith.constant 0.000000e+00 : f32
    %16 = vector.broadcast %cst_10 : f32 to vector<4x16x16xf32>
    %17 = arith.subf %16, %15 : vector<4x16x16xf32>
    %18 = math.exp %17 : vector<4x16x16xf32>
    %19 = arith.mulf %18, %3 : vector<4x16x16xf32>
    %cst_11 = arith.constant dense<0.000000e+00> : vector<4x16xf32>
    %20 = vector.multi_reduction <add>, %19, %cst_11 [2] : vector<4x16x16xf32> to vector<4x16xf32>
    %cst_12 = arith.constant dense<0.000000e+00> : vector<4xf32>
    %21 = vector.multi_reduction <add>, %20, %cst_12 [1] : vector<4x16xf32> to vector<4xf32>
    %22 = vector.shape_cast %21 : vector<4xf32> to vector<4x1xf32>
    %cst_13 = arith.constant dense<0.000000e+00> : vector<4x16xf32>
    %23 = vector.multi_reduction <add>, %18, %cst_13 [2] : vector<4x16x16xf32> to vector<4x16xf32>
    %cst_14 = arith.constant dense<0.000000e+00> : vector<4xf32>
    %24 = vector.multi_reduction <add>, %23, %cst_14 [1] : vector<4x16xf32> to vector<4xf32>
    %25 = vector.shape_cast %24 : vector<4xf32> to vector<4x1xf32>
    %cst_15 = arith.constant dense<0.000000e+00> : vector<4x16xf32>
    %26 = vector.multi_reduction <add>, %3, %cst_15 [2] : vector<4x16x16xf32> to vector<4x16xf32>
    %cst_16 = arith.constant dense<0.000000e+00> : vector<4xf32>
    %27 = vector.multi_reduction <add>, %26, %cst_16 [1] : vector<4x16xf32> to vector<4xf32>
    %28 = vector.shape_cast %27 : vector<4xf32> to vector<4x1xf32>
    %cst_17 = arith.constant 0.000000e+00 : f32
    %29 = vector.broadcast %cst_17 : f32 to vector<4x16x16xf32>
    %30 = arith.subf %29, %15 : vector<4x16x16xf32>
    %cst_18 = arith.constant -1.000000e+02 : f32
    %31 = vector.broadcast %cst_18 : f32 to vector<4x16x16xf32>
    %32 = arith.maximumf %30, %31 : vector<4x16x16xf32>
    %cst_19 = arith.constant 0.000000e+00 : f32
    %33 = vector.broadcast %cst_19 : f32 to vector<4x16x16xf32>
    %34 = arith.subf %33, %1 : vector<4x16x16xf32>
    %35 = arith.subf %34, %15 : vector<4x16x16xf32>
    %cst_20 = arith.constant -1.000000e+02 : f32
    %36 = vector.broadcast %cst_20 : f32 to vector<4x16x16xf32>
    %37 = arith.maximumf %35, %36 : vector<4x16x16xf32>
    %38 = arith.mulf %3, %32 : vector<4x16x16xf32>
    %cst_21 = arith.constant 1.000000e+00 : f32
    %39 = vector.broadcast %cst_21 : f32 to vector<4x16x16xf32>
    %40 = arith.subf %39, %3 : vector<4x16x16xf32>
    %41 = arith.mulf %40, %37 : vector<4x16x16xf32>
    %42 = arith.addf %38, %41 : vector<4x16x16xf32>
    %cst_22 = arith.constant 0.000000e+00 : f32
    %43 = vector.broadcast %cst_22 : f32 to vector<4x16x16xf32>
    %44 = arith.subf %43, %42 : vector<4x16x16xf32>
    %cst_23 = arith.constant 5.000000e-01 : f32
    %45 = vector.broadcast %cst_23 : f32 to vector<4x16x16xf32>
    %46 = arith.cmpf ogt, %3, %45 : vector<4x16x16xf32>
    %cst_24 = arith.constant 1.000000e+00 : f32
    %47 = vector.broadcast %cst_24 : f32 to vector<4x16x16xf32>
    %48 = arith.subf %47, %18 : vector<4x16x16xf32>
    %49 = arith.select %46, %18, %48 : vector<4x16x16xi1>, vector<4x16x16xf32>
    %cst_25 = arith.constant 1.000000e+00 : f32
    %50 = vector.broadcast %cst_25 : f32 to vector<4x16x16xf32>
    %51 = arith.subf %50, %49 : vector<4x16x16xf32>
    %cst_26 = arith.constant 1.000000e+00 : f32
    %52 = vector.broadcast %cst_26 : f32 to vector<4x16x16xf32>
    %53 = arith.mulf %52, %51 : vector<4x16x16xf32>
    %54 = arith.mulf %53, %51 : vector<4x16x16xf32>
    %cst_27 = arith.constant 1.000000e+00 : f32
    %55 = vector.broadcast %cst_27 : f32 to vector<4x16x16xf32>
    %56 = arith.mulf %55, %54 : vector<4x16x16xf32>
    %57 = arith.mulf %56, %44 : vector<4x16x16xf32>
    %cst_28 = arith.constant dense<0.000000e+00> : vector<4x16xf32>
    %58 = vector.multi_reduction <add>, %57, %cst_28 [2] : vector<4x16x16xf32> to vector<4x16xf32>
    %cst_29 = arith.constant dense<0.000000e+00> : vector<4xf32>
    %59 = vector.multi_reduction <add>, %58, %cst_29 [1] : vector<4x16xf32> to vector<4xf32>
    %60 = vector.shape_cast %59 : vector<4xf32> to vector<4x1xf32>
    %cst_30 = arith.constant 5.000000e-01 : f32
    %61 = vector.broadcast %cst_30 : f32 to vector<4x16x16xf32>
    %62 = arith.cmpf ogt, %3, %61 : vector<4x16x16xf32>
    %63 = arith.extui %62 : vector<4x16x16xi1> to vector<4x16x16xi32>
    %64 = arith.sitofp %63 : vector<4x16x16xi32> to vector<4x16x16xf32>
    %cst_31 = arith.constant 0.000000e+00 : f32
    %65 = vector.broadcast %cst_31 : f32 to vector<4x18x18xf32>
    %c0_32 = arith.constant 0 : index
    %c0_33 = arith.constant 0 : index
    %c0_34 = arith.constant 0 : index
    %66 = vector.load %arg4[%c0_32, %c0_33, %c0_34] : memref<4x18x18xf32, #tpu.memory_space<vmem>>, vector<4x18x18xf32>
    tpu.vector_store %arg4[%c0_32, %c0_33, %c0_34], %65 {strides = array<i32>} : memref<4x18x18xf32, #tpu.memory_space<vmem>>, vector<4x18x18xf32>,
    %c0_35 = arith.constant 0 : index
    %c1 = arith.constant 1 : index
    %c1_36 = arith.constant 1 : index
    %67 = vector.load %arg4[%c0_35, %c1, %c1_36] : memref<4x18x18xf32, #tpu.memory_space<vmem>>, vector<4x16x16xf32>
    tpu.vector_store %arg4[%c0_35, %c1, %c1_36], %64 {strides = array<i32>} : memref<4x18x18xf32, #tpu.memory_space<vmem>>, vector<4x16x16xf32>,
    %c0_37 = arith.constant 0 : index
    %c0_38 = arith.constant 0 : index
    %c0_39 = arith.constant 0 : index
    %68 = vector.load %arg4[%c0_37, %c0_38, %c0_39] : memref<4x18x18xf32, #tpu.memory_space<vmem>>, vector<4x16x16xf32>
    %c0_40 = arith.constant 0 : index
    %c0_41 = arith.constant 0 : index
    %c1_42 = arith.constant 1 : index
    %69 = vector.load %arg4[%c0_40, %c0_41, %c1_42] : memref<4x18x18xf32, #tpu.memory_space<vmem>>, vector<4x16x16xf32>
    %70 = arith.addf %68, %69 : vector<4x16x16xf32>
    %c0_43 = arith.constant 0 : index
    %c0_44 = arith.constant 0 : index
    %c2 = arith.constant 2 : index
    %71 = vector.load %arg4[%c0_43, %c0_44, %c2] : memref<4x18x18xf32, #tpu.memory_space<vmem>>, vector<4x16x16xf32>
    %72 = arith.addf %70, %71 : vector<4x16x16xf32>
    %c0_45 = arith.constant 0 : index
    %c1_46 = arith.constant 1 : index
    %c0_47 = arith.constant 0 : index
    %73 = vector.load %arg4[%c0_45, %c1_46, %c0_47] : memref<4x18x18xf32, #tpu.memory_space<vmem>>, vector<4x16x16xf32>
    %74 = arith.addf %72, %73 : vector<4x16x16xf32>
    %c0_48 = arith.constant 0 : index
    %c1_49 = arith.constant 1 : index
    %c1_50 = arith.constant 1 : index
    %75 = vector.load %arg4[%c0_48, %c1_49, %c1_50] : memref<4x18x18xf32, #tpu.memory_space<vmem>>, vector<4x16x16xf32>
    %76 = arith.addf %74, %75 : vector<4x16x16xf32>
    %c0_51 = arith.constant 0 : index
    %c1_52 = arith.constant 1 : index
    %c2_53 = arith.constant 2 : index
    %77 = vector.load %arg4[%c0_51, %c1_52, %c2_53] : memref<4x18x18xf32, #tpu.memory_space<vmem>>, vector<4x16x16xf32>
    %78 = arith.addf %76, %77 : vector<4x16x16xf32>
    %c0_54 = arith.constant 0 : index
    %c2_55 = arith.constant 2 : index
    %c0_56 = arith.constant 0 : index
    %79 = vector.load %arg4[%c0_54, %c2_55, %c0_56] : memref<4x18x18xf32, #tpu.memory_space<vmem>>, vector<4x16x16xf32>
    %80 = arith.addf %78, %79 : vector<4x16x16xf32>
    %c0_57 = arith.constant 0 : index
    %c2_58 = arith.constant 2 : index
    %c1_59 = arith.constant 1 : index
    %81 = vector.load %arg4[%c0_57, %c2_58, %c1_59] : memref<4x18x18xf32, #tpu.memory_space<vmem>>, vector<4x16x16xf32>
    %82 = arith.addf %80, %81 : vector<4x16x16xf32>
    %c0_60 = arith.constant 0 : index
    %c2_61 = arith.constant 2 : index
    %c2_62 = arith.constant 2 : index
    %83 = vector.load %arg4[%c0_60, %c2_61, %c2_62] : memref<4x18x18xf32, #tpu.memory_space<vmem>>, vector<4x16x16xf32>
    %84 = arith.addf %82, %83 : vector<4x16x16xf32>
    %cst_63 = arith.constant 5.000000e-01 : f32
    %85 = vector.broadcast %cst_63 : f32 to vector<4x16x16xf32>
    %86 = arith.cmpf ogt, %84, %85 : vector<4x16x16xf32>
    %cst_64 = arith.constant 8.500000e+00 : f32
    %87 = vector.broadcast %cst_64 : f32 to vector<4x16x16xf32>
    %88 = arith.cmpf olt, %84, %87 : vector<4x16x16xf32>
    %89 = arith.andi %86, %88 : vector<4x16x16xi1>
    %90 = arith.extui %89 : vector<4x16x16xi1> to vector<4x16x16xi32>
    %91 = arith.sitofp %90 : vector<4x16x16xi32> to vector<4x16x16xf32>
    %92 = arith.mulf %1, %91 : vector<4x16x16xf32>
    %93 = arith.mulf %3, %91 : vector<4x16x16xf32>
    %cst_65 = arith.constant 0.000000e+00 : f32
    %94 = vector.broadcast %cst_65 : f32 to vector<4x16x16xf32>
    %95 = arith.maximumf %92, %94 : vector<4x16x16xf32>
    %96 = arith.mulf %92, %93 : vector<4x16x16xf32>
    %97 = arith.subf %95, %96 : vector<4x16x16xf32>
    %98 = math.absf %92 : vector<4x16x16xf32>
    %cst_66 = arith.constant 0.000000e+00 : f32
    %99 = vector.broadcast %cst_66 : f32 to vector<4x16x16xf32>
    %100 = arith.subf %99, %98 : vector<4x16x16xf32>
    %101 = math.exp %100 : vector<4x16x16xf32>
    %cst_67 = arith.constant 1.000000e+00 : f32
    %102 = vector.broadcast %cst_67 : f32 to vector<4x16x16xf32>
    %103 = arith.addf %102, %101 : vector<4x16x16xf32>
    %104 = math.log %103 : vector<4x16x16xf32>
    %105 = arith.addf %97, %104 : vector<4x16x16xf32>
    %cst_68 = arith.constant dense<0.000000e+00> : vector<4x16xf32>
    %106 = vector.multi_reduction <add>, %105, %cst_68 [2] : vector<4x16x16xf32> to vector<4x16xf32>
    %cst_69 = arith.constant dense<0.000000e+00> : vector<4xf32>
    %107 = vector.multi_reduction <add>, %106, %cst_69 [1] : vector<4x16xf32> to vector<4xf32>
    %108 = vector.shape_cast %107 : vector<4xf32> to vector<4x1xf32>
    %109 = tpu.iota {dimensions = array<i32: 1>} : vector<4x128xi32>
    %c0_i32 = arith.constant 0 : i32
    %110 = vector.broadcast %c0_i32 : i32 to vector<4x128xi32>
    %111 = arith.cmpi eq, %109, %110 : vector<4x128xi32>
    %cst_70 = arith.constant 0.000000e+00 : f32
    %112 = vector.shape_cast %22 : vector<4x1xf32> to vector<4x1xf32>
    %113 = vector.broadcast %112 : vector<4x1xf32> to vector<4x128xf32>
    %114 = vector.broadcast %cst_70 : f32 to vector<4x128xf32>
    %115 = arith.select %111, %113, %114 : vector<4x128xi1>, vector<4x128xf32>
    %c1_i32 = arith.constant 1 : i32
    %116 = vector.broadcast %c1_i32 : i32 to vector<4x128xi32>
    %117 = arith.cmpi eq, %109, %116 : vector<4x128xi32>
    %cst_71 = arith.constant 0.000000e+00 : f32
    %118 = vector.shape_cast %25 : vector<4x1xf32> to vector<4x1xf32>
    %119 = vector.broadcast %118 : vector<4x1xf32> to vector<4x128xf32>
    %120 = vector.broadcast %cst_71 : f32 to vector<4x128xf32>
    %121 = arith.select %117, %119, %120 : vector<4x128xi1>, vector<4x128xf32>
    %122 = arith.addf %115, %121 : vector<4x128xf32>
    %c2_i32 = arith.constant 2 : i32
    %123 = vector.broadcast %c2_i32 : i32 to vector<4x128xi32>
    %124 = arith.cmpi eq, %109, %123 : vector<4x128xi32>
    %cst_72 = arith.constant 0.000000e+00 : f32
    %125 = vector.shape_cast %28 : vector<4x1xf32> to vector<4x1xf32>
    %126 = vector.broadcast %125 : vector<4x1xf32> to vector<4x128xf32>
    %127 = vector.broadcast %cst_72 : f32 to vector<4x128xf32>
    %128 = arith.select %124, %126, %127 : vector<4x128xi1>, vector<4x128xf32>
    %129 = arith.addf %122, %128 : vector<4x128xf32>
    %c3_i32 = arith.constant 3 : i32
    %130 = vector.broadcast %c3_i32 : i32 to vector<4x128xi32>
    %131 = arith.cmpi eq, %109, %130 : vector<4x128xi32>
    %cst_73 = arith.constant 0.000000e+00 : f32
    %132 = vector.shape_cast %60 : vector<4x1xf32> to vector<4x1xf32>
    %133 = vector.broadcast %132 : vector<4x1xf32> to vector<4x128xf32>
    %134 = vector.broadcast %cst_73 : f32 to vector<4x128xf32>
    %135 = arith.select %131, %133, %134 : vector<4x128xi1>, vector<4x128xf32>
    %136 = arith.addf %129, %135 : vector<4x128xf32>
    %c4_i32 = arith.constant 4 : i32
    %137 = vector.broadcast %c4_i32 : i32 to vector<4x128xi32>
    %138 = arith.cmpi eq, %109, %137 : vector<4x128xi32>
    %cst_74 = arith.constant 0.000000e+00 : f32
    %139 = vector.shape_cast %108 : vector<4x1xf32> to vector<4x1xf32>
    %140 = vector.broadcast %139 : vector<4x1xf32> to vector<4x128xf32>
    %141 = vector.broadcast %cst_74 : f32 to vector<4x128xf32>
    %142 = arith.select %138, %140, %141 : vector<4x128xi1>, vector<4x128xf32>
    %143 = arith.addf %136, %142 : vector<4x128xf32>
    %c0_75 = arith.constant 0 : index
    %c0_76 = arith.constant 0 : index
    %c0_77 = arith.constant 0 : index
    %144 = vector.load %arg3[%c0_75, %c0_76, %c0_77] : memref<1x4x128xf32, #tpu.memory_space<vmem>>, vector<1x4x128xf32>
    %145 = vector.shape_cast %144 : vector<1x4x128xf32> to vector<4x128xf32>
    %146 = vector.shape_cast %143 : vector<4x128xf32> to vector<1x4x128xf32>
    tpu.vector_store %arg3[%c0_75, %c0_76, %c0_77], %146 {strides = array<i32>} : memref<1x4x128xf32, #tpu.memory_space<vmem>>, vector<1x4x128xf32>,
    return
  }
  func.func @transform_0(%arg0: i32) -> (i32, i32, i32, i32) {
    %c0_i32 = arith.constant 0 : i32
    %c0_i32_0 = arith.constant 0 : i32
    %c0_i32_1 = arith.constant 0 : i32
    %c0_i32_2 = arith.constant 0 : i32
    return %arg0, %c0_i32, %c0_i32_0, %c0_i32_1 : i32, i32, i32, i32
  }
  func.func @transform_1(%arg0: i32) -> (i32, i32, i32, i32) {
    %c0_i32 = arith.constant 0 : i32
    %c0_i32_0 = arith.constant 0 : i32
    %c0_i32_1 = arith.constant 0 : i32
    %c0_i32_2 = arith.constant 0 : i32
    return %arg0, %c0_i32, %c0_i32_0, %c0_i32_1 : i32, i32, i32, i32
  }
  func.func @transform_2(%arg0: i32) -> (i32, i32, i32) {
    %c0_i32 = arith.constant 0 : i32
    %c0_i32_0 = arith.constant 0 : i32
    %c0_i32_1 = arith.constant 0 : i32
    return %arg0, %c0_i32, %c0_i32_0 : i32, i32, i32
  }
}

</mosaic_0001>

<llo_original>
// kernel: tpu_custom_call.1
$region0: #{tpu_custom_call.1}
  #allocation0 [shape = 'u32[]', space=smem, size = 0x4, offset = 0x4, fixed_abs, tag = 'smem constant byte address 0x4 - core index']
  #allocation1 [shape = 'u32[72,128]{1,0:T(1,128)}', space=vmem, size = 0x9000, scoped, tag = 'internal scratch']
  #allocation2 [shape = 'f32[4,18,18]{2,1,0:T(8,128)}', space=vmem, size = 0xc000, scoped, tag = 'scratch operand']
  %s0 = inlined_call_operand.hbm [shape: f32[2,4,16,16], index: 0, kind: input, shape index: {}]
  %s1 = inlined_call_operand.hbm [shape: f32[2,4,16,16], index: 1, kind: input, shape index: {}]
  %s2 = inlined_call_operand.hbm [shape: f32[2,4,128], index: 2, kind: output, shape index: {}]
  %s3 = sld [smem:[#allocation0]]
  $region49: #{tpu_custom_call.1} parent=0
    _
  %s5 = ssub.s32 1, %s3
  %s6 = scalar_select 0, %s5, %s3
  $region1: #{tpu_custom_call.1} parent=0
    #allocation3 [shape = 'u8[65536]{0}', space=vmem, size = 0x10000, scoped, tag = 'input window, operand 0']
    #allocation4 [shape = 's32[2]{0}', space=sflag, size = 0x8, scoped, tag = 'scoped memory for tpu_custom_call.1']
    #allocation5 [shape = 's32[2]{0}', space=sflag, size = 0x8, scoped, tag = 'scoped memory for tpu_custom_call.1']
    #allocation6 [shape = 'u8[65536]{0}', space=vmem, size = 0x10000, scoped, tag = 'input window, operand 1']
    #allocation7 [shape = 's32[2]{0}', space=sflag, size = 0x8, scoped, tag = 'scoped memory for tpu_custom_call.1']
    #allocation8 [shape = 'u8[4096]{0}', space=vmem, size = 0x1000, scoped, tag = 'output window, operand 0']
    %7 = vsyncpa [#allocation4], 0
    %s8 = scalar_lea.sflag [#allocation4], 1
    %9 = vsyncpa %s8, 0
    %10 = vsyncpa [#allocation7], 0
    %s11 = scalar_lea.sflag [#allocation7], 1
    %12 = vsyncpa %s11, 0
    %13 = vsyncpa [#allocation5], 0
    %s14 = scalar_lea.sflag [#allocation5], 1
    %15 = vsyncpa %s14, 0
    loop: start=0, step=1, limit=4
    $region2: #{tpu_custom_call.1} parent=1 // loop_pre_header
      _
    $region3: #{tpu_custom_call.1} parent=1 // loop_header
      %s17 = sphi 0, %s21
      %p18 = scmp.ge.s32.totalorder %s17, 4
      %s27 = sphi 0, %s29
      %s30 = sphi 0, %s27
      %s31 = sphi 0, %s30
      %s47 = sphi 0, %s31
      %s53 = sphi 0, %s55
      %s56 = sphi 0, %s53
      %s57 = sphi 0, %s56
      %s73 = sphi 0, %s57
      %s79 = sphi 0, %s81
      %s82 = sphi 0, %s79
      %s83 = sphi 0, %s82
      %s99 = sphi 0, %s83
    $region4: #{tpu_custom_call.1} parent=1 // loop_header_branch
      %20 = sbr.rel (%p18) target = $region8
    $region5: #{tpu_custom_call.1} parent=1 // loop_body
      %s22 = ssub.s32 %s17, 1
      %s23 = ssub.s32 %s17, 2
      %s24 = sadd.s32 %s17, 1
      %s25 = ssub.s32 %s17, %s24
      %p26 = scmp.eq.s32.totalorder %s25, 0
      %s28 = sadd.s32 %s27, 1
      %s29 = scalar_select %p26, %s27, %s28
      %p32 = pneg %p26
      %p33 = scmp.eq.s32.totalorder %s17, 1
      %p34 = por %p32, %p33
      %p35 = scmp.ne.s32.totalorder %s27, %s30
      %p36 = scmp.eq.s32.totalorder %s17, 0
      %p37 = por %p35, %p36
      %p38 = scmp.ne.s32.totalorder %s27, %s30
      %p39 = scmp.eq.s32.totalorder %s22, 1
      %p40 = por %p38, %p39
      %p41 = scmp.ne.s32.totalorder %s30, %s31
      %p42 = scmp.eq.s32.totalorder %s22, 0
      %p43 = por %p41, %p42
      %p44 = scmp.ne.s32.totalorder %s30, %s31
      %p45 = scmp.eq.s32.totalorder %s23, 1
      %p46 = por %p44, %p45
      %p48 = scmp.ne.s32.totalorder %s31, %s47
      %p49 = scmp.eq.s32.totalorder %s23, 0
      %p50 = por %p48, %p49
      %s51 = ssub.s32 %s17, %s24
      %p52 = scmp.eq.s32.totalorder %s51, 0
      %s54 = sadd.s32 %s53, 1
      %s55 = scalar_select %p52, %s53, %s54
      %p58 = pneg %p52
      %p59 = scmp.eq.s32.totalorder %s17, 1
      %p60 = por %p58, %p59
      %p61 = scmp.ne.s32.totalorder %s53, %s56
      %p62 = scmp.eq.s32.totalorder %s17, 0
      %p63 = por %p61, %p62
      %p64 = scmp.ne.s32.totalorder %s53, %s56
      %p65 = scmp.eq.s32.totalorder %s22, 1
      %p66 = por %p64, %p65
      %p67 = scmp.ne.s32.totalorder %s56, %s57
      %p68 = scmp.eq.s32.totalorder %s22, 0
      %p69 = por %p67, %p68
      %p70 = scmp.ne.s32.totalorder %s56, %s57
      %p71 = scmp.eq.s32.totalorder %s23, 1
      %p72 = por %p70, %p71
      %p74 = scmp.ne.s32.totalorder %s57, %s73
      %p75 = scmp.eq.s32.totalorder %s23, 0
      %p76 = por %p74, %p75
      %s77 = ssub.s32 %s17, %s24
      %p78 = scmp.eq.s32.totalorder %s77, 0
      %s80 = sadd.s32 %s79, 1
      %s81 = scalar_select %p78, %s79, %s80
      %p84 = pneg %p78
      %p85 = scmp.eq.s32.totalorder %s17, 1
      %p86 = por %p84, %p85
      %p87 = scmp.ne.s32.totalorder %s79, %s82
      %p88 = scmp.eq.s32.totalorder %s17, 0
      %p89 = por %p87, %p88
      %p90 = scmp.ne.s32.totalorder %s79, %s82
      %p91 = scmp.eq.s32.totalorder %s22, 1
      %p92 = por %p90, %p91
      %p93 = scmp.ne.s32.totalorder %s82, %s83
      %p94 = scmp.eq.s32.totalorder %s22, 0
      %p95 = por %p93, %p94
      %p96 = scmp.ne.s32.totalorder %s82, %s83
      %p97 = scmp.eq.s32.totalorder %s23, 1
      %p98 = por %p96, %p97
      %p100 = scmp.ne.s32.totalorder %s83, %s99
      %p101 = scmp.eq.s32.totalorder %s23, 0
      %p102 = por %p100, %p101
      %p103 = scmp.le.s32.totalorder 1, %s17
      %p104 = scmp.lt.s32.totalorder %s17, 3
      %p105 = pnand %p103, %p104
      %p106 = pneg %p105
      // Predicated region
      $region9: #{tpu_custom_call.1} parent=5 // pred_check
        _
      $region10: #{tpu_custom_call.1} parent=5 // pred_check_branch
        %108 = sbr.rel (%p105) target = $region12
      $region11: #{tpu_custom_call.1} parent=5 // pred_region
        %s109 = ssub.s32 %s17, 1
      $region12: #{tpu_custom_call.1} parent=5 // pred_fallthru
        _
      %p110 = scmp.lt.s32.totalorder %s17, 2
      // Predicated region
      $region13: #{tpu_custom_call.1} parent=5 // pred_check
        %p111 = pneg %p110
      $region14: #{tpu_custom_call.1} parent=5 // pred_check_branch
        %113 = sbr.rel (%p111) target = $region16
      $region15: #{tpu_custom_call.1} parent=5 // pred_region
        // Predicated region
        $region17: #{tpu_custom_call.1} parent=15 // pred_check
          %p114 = pneg %p37
        $region18: #{tpu_custom_call.1} parent=15 // pred_check_branch
          %116 = sbr.rel (%p114) target = $region20
        $region19: #{tpu_custom_call.1} parent=15 // pred_region
          %s117 = sand.u32 %s27, 1
          %s118 = scalar_lea.sflag [#allocation4], %s117
          %s119 = sand.u32 %s27, 1
          %s120 = smul.addr %s119, 64
          %s121 = scalar_lea.vmem [#allocation3], %s120
          %123 = vsyncadd %s118, 0
          %s124 = smul.addr %s17, 8
          %s125 = smul.addr %s124, 8
          %s126 = scalar_lea.hbm %s0, %s125
          %s127 = sshll.u32 %s126, 4
          %s128 = int_to_ptr.hbm [resolvable:$true] %s127
          %s129 = sshll.u32 %s121, 4
          %s130 = int_to_ptr.vmem [resolvable:$true] %s129
          %135 = dma.hbm_to_vmem [thread:$0]  %s128, 1024, %s130, %s118, 128, 128, 8
        $region20: #{tpu_custom_call.1} parent=15 // pred_fallthru
          _
        // Predicated region
        $region21: #{tpu_custom_call.1} parent=15 // pred_check
          %p136 = pneg %p63
        $region22: #{tpu_custom_call.1} parent=15 // pred_check_branch
          %138 = sbr.rel (%p136) target = $region24
        $region23: #{tpu_custom_call.1} parent=15 // pred_region
          %s139 = sand.u32 %s53, 1
          %s140 = scalar_lea.sflag [#allocation7], %s139
          %s141 = sand.u32 %s53, 1
          %s142 = smul.addr %s141, 64
          %s143 = scalar_lea.vmem [#allocation6], %s142
          %145 = vsyncadd %s140, 0
          %s146 = smul.addr %s17, 8
          %s147 = smul.addr %s146, 8
          %s148 = scalar_lea.hbm %s1, %s147
          %s149 = sshll.u32 %s148, 4
          %s150 = int_to_ptr.hbm [resolvable:$true] %s149
          %s151 = sshll.u32 %s143, 4
          %s152 = int_to_ptr.vmem [resolvable:$true] %s151
          %157 = dma.hbm_to_vmem [thread:$0]  %s150, 1024, %s152, %s140, 128, 128, 8
        $region24: #{tpu_custom_call.1} parent=15 // pred_fallthru
          _
      $region16: #{tpu_custom_call.1} parent=5 // pred_fallthru
        _
      %p158 = scmp.le.s32.totalorder 1, %s17
      %p159 = scmp.lt.s32.totalorder %s17, 3
      %p160 = pnand %p158, %p159
      %p161 = pneg %p160
      // Predicated region
      $region25: #{tpu_custom_call.1} parent=5 // pred_check
        _
      $region26: #{tpu_custom_call.1} parent=5 // pred_check_branch
        %163 = sbr.rel (%p160) target = $region28
      $region27: #{tpu_custom_call.1} parent=5 // pred_region
        %s164 = ssub.s32 %s17, 1
        %s165 = sand.u32 %s30, 1
        %s166 = scalar_lea.sflag [#allocation4], %s165
        %s167 = sand.u32 %s30, 1
        %s168 = smul.addr %s167, 64
        %s169 = scalar_lea.vmem [#allocation3], %s168
        // Predicated region
        $region29: #{tpu_custom_call.1} parent=27 // pred_check
          %p170 = pneg %p43
        $region30: #{tpu_custom_call.1} parent=27 // pred_check_branch
          %172 = sbr.rel (%p170) target = $region32
        $region31: #{tpu_custom_call.1} parent=27 // pred_region
          %174 = dma.done %s166, 1024
        $region32: #{tpu_custom_call.1} parent=27 // pred_fallthru
          _
        %s175 = sand.u32 %s56, 1
        %s176 = scalar_lea.sflag [#allocation7], %s175
        %s177 = sand.u32 %s56, 1
        %s178 = smul.addr %s177, 64
        %s179 = scalar_lea.vmem [#allocation6], %s178
        // Predicated region
        $region33: #{tpu_custom_call.1} parent=27 // pred_check
          %p180 = pneg %p69
        $region34: #{tpu_custom_call.1} parent=27 // pred_check_branch
          %182 = sbr.rel (%p180) target = $region36
        $region35: #{tpu_custom_call.1} parent=27 // pred_region
          %184 = dma.done %s176, 1024
        $region36: #{tpu_custom_call.1} parent=27 // pred_fallthru
          _
        %s185 = sand.u32 %s30, 1
        %s186 = scalar_lea.sflag [#allocation4], %s185
        %s187 = sand.u32 %s30, 1
        %s188 = smul.addr %s187, 64
        %s189 = scalar_lea.vmem [#allocation3], %s188
        %p190 = pneg %p43
        %p191 = pneg %p40
        %s192 = sand.u32 %s56, 1
        %s193 = scalar_lea.sflag [#allocation7], %s192
        %s194 = sand.u32 %s56, 1
        %s195 = smul.addr %s194, 64
        %s196 = scalar_lea.vmem [#allocation6], %s195
        %p197 = pneg %p69
        %p198 = pneg %p66
        %p199 = pneg %p95
        %p200 = pneg %p92
        %s201 = sand.u32 %s82, 1
        %s202 = scalar_lea.sflag [#allocation5], %s201
        %s203 = sand.u32 %s82, 1
        %s204 = smul.addr %s203, 4
        %s205 = scalar_lea.vmem [#allocation8], %s204
        %v206 = vld [vmem:[%s169] sm:$0xff]
        %v207 = vld [vmem:[%s169 + $0x8] sm:$0xff]
        %v208 = vld [vmem:[%s169 + $0x10] sm:$0xff]
        %v209 = vld [vmem:[%s169 + $0x18] sm:$0xff]
        %v210 = vld [vmem:[%s169 + $0x20] sm:$0xff]
        %v211 = vld [vmem:[%s169 + $0x28] sm:$0xff]
        %v212 = vld [vmem:[%s169 + $0x30] sm:$0xff]
        %v213 = vld [vmem:[%s169 + $0x38] sm:$0xff]
        %v214 = vld [vmem:[%s179] sm:$0xff]
        %v215 = vld [vmem:[%s179 + $0x8] sm:$0xff]
        %v216 = vld [vmem:[%s179 + $0x10] sm:$0xff]
        %v217 = vld [vmem:[%s179 + $0x18] sm:$0xff]
        %v218 = vld [vmem:[%s179 + $0x20] sm:$0xff]
        %v219 = vld [vmem:[%s179 + $0x28] sm:$0xff]
        %v220 = vld [vmem:[%s179 + $0x30] sm:$0xff]
        %v221 = vld [vmem:[%s179 + $0x38] sm:$0xff]
        %v222 = vsub.f32 0.0, %v206
        %v223 = vsub.f32 0.0, %v207
        %v224 = vsub.f32 0.0, %v208
        %v225 = vsub.f32 0.0, %v209
        %v226 = vsub.f32 0.0, %v210
        %v227 = vsub.f32 0.0, %v211
        %v228 = vsub.f32 0.0, %v212
        %v229 = vsub.f32 0.0, %v213
        %v230 = vmax.f32 %v222, 0.0
        %v231 = vmax.f32 %v223, 0.0
        %v232 = vmax.f32 %v224, 0.0
        %v233 = vmax.f32 %v225, 0.0
        %v234 = vmax.f32 %v226, 0.0
        %v235 = vmax.f32 %v227, 0.0
        %v236 = vmax.f32 %v228, 0.0
        %v237 = vmax.f32 %v229, 0.0
        %v238 = vand.u32 2147483647, %v206
        %v239 = vand.u32 2147483647, %v207
        %v240 = vand.u32 2147483647, %v208
        %v241 = vand.u32 2147483647, %v209
        %v242 = vand.u32 2147483647, %v210
        %v243 = vand.u32 2147483647, %v211
        %v244 = vand.u32 2147483647, %v212
        %v245 = vand.u32 2147483647, %v213
        %v246 = vsub.f32 0.0, %v238
        %v247 = vsub.f32 0.0, %v239
        %v248 = vsub.f32 0.0, %v240
        %v249 = vsub.f32 0.0, %v241
        %v250 = vsub.f32 0.0, %v242
        %v251 = vsub.f32 0.0, %v243
        %v252 = vsub.f32 0.0, %v244
        %v253 = vsub.f32 0.0, %v245
        %v254 = vmul.f32 %v246, 1.442695
        %v255 = vpow.pop %v254
        %v256 = vmul.f32 %v247, 1.442695
        %v257 = vpow.pop %v256
        %v258 = vmul.f32 %v248, 1.442695
        %v259 = vpow.pop %v258
        %v260 = vmul.f32 %v249, 1.442695
        %v261 = vpow.pop %v260
        %v262 = vmul.f32 %v250, 1.442695
        %v263 = vpow.pop %v262
        %v264 = vmul.f32 %v251, 1.442695
        %v265 = vpow.pop %v264
        %v266 = vmul.f32 %v252, 1.442695
        %v267 = vpow.pop %v266
        %v268 = vmul.f32 %v253, 1.442695
        %v269 = vpow.pop %v268
        %v270 = vadd.f32 %v255, 1.0
        %v271 = vadd.f32 %v257, 1.0
        %v272 = vadd.f32 %v259, 1.0
        %v273 = vadd.f32 %v261, 1.0
        %v274 = vadd.f32 %v263, 1.0
        %v275 = vadd.f32 %v265, 1.0
        %v276 = vadd.f32 %v267, 1.0
        %v277 = vadd.f32 %v269, 1.0
        %v278 = vlog2.pop %v270
        %v279 = vmul.f32 %v278, 0.6931472
        %v280 = vlog2.pop %v271
        %v281 = vmul.f32 %v280, 0.6931472
        %v282 = vlog2.pop %v272
        %v283 = vmul.f32 %v282, 0.6931472
        %v284 = vlog2.pop %v273
        %v285 = vmul.f32 %v284, 0.6931472
        %v286 = vlog2.pop %v274
        %v287 = vmul.f32 %v286, 0.6931472
        %v288 = vlog2.pop %v275
        %v289 = vmul.f32 %v288, 0.6931472
        %v290 = vlog2.pop %v276
        %v291 = vmul.f32 %v290, 0.6931472
        %v292 = vlog2.pop %v277
        %v293 = vmul.f32 %v292, 0.6931472
        %v294 = vadd.f32 %v230, %v279
        %v295 = vadd.f32 %v231, %v281
        %v296 = vadd.f32 %v232, %v283
        %v297 = vadd.f32 %v233, %v285
        %v298 = vadd.f32 %v234, %v287
        %v299 = vadd.f32 %v235, %v289
        %v300 = vadd.f32 %v236, %v291
        %v301 = vadd.f32 %v237, %v293
        %v302 = vsub.f32 0.0, %v294
        %v303 = vsub.f32 0.0, %v295
        %v304 = vsub.f32 0.0, %v296
        %v305 = vsub.f32 0.0, %v297
        %v306 = vsub.f32 0.0, %v298
        %v307 = vsub.f32 0.0, %v299
        %v308 = vsub.f32 0.0, %v300
        %v309 = vsub.f32 0.0, %v301
        %v310 = vmul.f32 %v302, 1.442695
        %v311 = vpow.pop %v310
        %v312 = vmul.f32 %v303, 1.442695
        %v313 = vpow.pop %v312
        %v314 = vmul.f32 %v304, 1.442695
        %v315 = vpow.pop %v314
        %v316 = vmul.f32 %v305, 1.442695
        %v317 = vpow.pop %v316
        %v318 = vmul.f32 %v306, 1.442695
        %v319 = vpow.pop %v318
        %v320 = vmul.f32 %v307, 1.442695
        %v321 = vpow.pop %v320
        %v322 = vmul.f32 %v308, 1.442695
        %v323 = vpow.pop %v322
        %v324 = vmul.f32 %v309, 1.442695
        %v325 = vpow.pop %v324
        %v326 = vmul.f32 %v311, %v214
        %v327 = vmul.f32 %v313, %v215
        %v328 = vmul.f32 %v315, %v216
        %v329 = vmul.f32 %v317, %v217
        %v330 = vmul.f32 %v319, %v218
        %v331 = vmul.f32 %v321, %v219
        %v332 = vmul.f32 %v323, %v220
        %v333 = vmul.f32 %v325, %v221
        %vm334 = vcmask 130048
        %v335 = vsel %vm334, %v326, 0.0
        %336 = vadd.xlane.f32.xlu0 %v335
        %v337 = vpop.xlane.xlu0 %336
        %v338 = vsel %vm334, %v327, 0.0
        %339 = vadd.xlane.f32.xlu0 %v338
        %v340 = vpop.xlane.xlu0 %339
        %v341 = vsel %vm334, %v328, 0.0
        %342 = vadd.xlane.f32.xlu0 %v341
        %v343 = vpop.xlane.xlu0 %342
        %v344 = vsel %vm334, %v329, 0.0
        %345 = vadd.xlane.f32.xlu0 %v344
        %v346 = vpop.xlane.xlu0 %345
        %v347 = vsel %vm334, %v330, 0.0
        %348 = vadd.xlane.f32.xlu0 %v347
        %v349 = vpop.xlane.xlu0 %348
        %v350 = vsel %vm334, %v331, 0.0
        %351 = vadd.xlane.f32.xlu0 %v350
        %v352 = vpop.xlane.xlu0 %351
        %v353 = vsel %vm334, %v332, 0.0
        %354 = vadd.xlane.f32.xlu0 %v353
        %v355 = vpop.xlane.xlu0 %354
        %v356 = vsel %vm334, %v333, 0.0
        %357 = vadd.xlane.f32.xlu0 %v356
        %v358 = vpop.xlane.xlu0 %357
        %v367 = vlaneseq
        %v368 = vand.u32 %v367, 127
        %v369 = vperm.slane %v337, %v368
        %v370 = vadd.s32 %v368, 4294967288
        %v371 = vperm.slane %v340, %v370
        %vm372 = vcmask 130112
        %v373 = vsel %vm372, %v371, %v369
        %v374 = vperm.slane %v343, %v368
        %v375 = vperm.slane %v346, %v370
        %v376 = vsel %vm372, %v375, %v374
        %v377 = vperm.slane %v349, %v368
        %v378 = vperm.slane %v352, %v370
        %v379 = vsel %vm372, %v378, %v377
        %v380 = vperm.slane %v355, %v368
        %v381 = vperm.slane %v358, %v370
        %v382 = vsel %vm372, %v381, %v380
        %vm383 = vcmask 1041409
        %v384 = vsel %vm383, %v376, %v373
        %vm385 = vcmask 1042434
        %v386 = vsel %vm385, %v379, %v384
        %vm387 = vcmask 1043459
        %v388 = vsel %vm387, %v382, %v386
        %vm390 = vcmask 125952
        %v391 = vsel %vm390, %v388, 0.0
        %392 = vadd.xlane.f32.xlu0 %v391
        %v393 = vpop.xlane.xlu0 %392
        %v394 = vsel %vm334, %v311, 0.0
        %395 = vadd.xlane.f32.xlu0 %v394
        %v396 = vpop.xlane.xlu0 %395
        %v397 = vsel %vm334, %v313, 0.0
        %398 = vadd.xlane.f32.xlu0 %v397
        %v399 = vpop.xlane.xlu0 %398
        %v400 = vsel %vm334, %v315, 0.0
        %401 = vadd.xlane.f32.xlu0 %v400
        %v402 = vpop.xlane.xlu0 %401
        %v403 = vsel %vm334, %v317, 0.0
        %404 = vadd.xlane.f32.xlu0 %v403
        %v405 = vpop.xlane.xlu0 %404
        %v406 = vsel %vm334, %v319, 0.0
        %407 = vadd.xlane.f32.xlu0 %v406
        %v408 = vpop.xlane.xlu0 %407
        %v409 = vsel %vm334, %v321, 0.0
        %410 = vadd.xlane.f32.xlu0 %v409
        %v411 = vpop.xlane.xlu0 %410
        %v412 = vsel %vm334, %v323, 0.0
        %413 = vadd.xlane.f32.xlu0 %v412
        %v414 = vpop.xlane.xlu0 %413
        %v415 = vsel %vm334, %v325, 0.0
        %416 = vadd.xlane.f32.xlu0 %v415
        %v417 = vpop.xlane.xlu0 %416
        %v426 = vperm.slane %v396, %v368
        %v427 = vperm.slane %v399, %v370
        %v428 = vsel %vm372, %v427, %v426
        %v429 = vperm.slane %v402, %v368
        %v430 = vperm.slane %v405, %v370
        %v431 = vsel %vm372, %v430, %v429
        %v432 = vperm.slane %v408, %v368
        %v433 = vperm.slane %v411, %v370
        %v434 = vsel %vm372, %v433, %v432
        %v435 = vperm.slane %v414, %v368
        %v436 = vperm.slane %v417, %v370
        %v437 = vsel %vm372, %v436, %v435
        %v438 = vsel %vm383, %v431, %v428
        %v439 = vsel %vm385, %v434, %v438
        %v440 = vsel %vm387, %v437, %v439
        %v442 = vsel %vm390, %v440, 0.0
        %443 = vadd.xlane.f32.xlu0 %v442
        %v444 = vpop.xlane.xlu0 %443
        %v445 = vsel %vm334, %v214, 0.0
        %446 = vadd.xlane.f32.xlu0 %v445
        %v447 = vpop.xlane.xlu0 %446
        %v448 = vsel %vm334, %v215, 0.0
        %449 = vadd.xlane.f32.xlu0 %v448
        %v450 = vpop.xlane.xlu0 %449
        %v451 = vsel %vm334, %v216, 0.0
        %452 = vadd.xlane.f32.xlu0 %v451
        %v453 = vpop.xlane.xlu0 %452
        %v454 = vsel %vm334, %v217, 0.0
        %455 = vadd.xlane.f32.xlu0 %v454
        %v456 = vpop.xlane.xlu0 %455
        %v457 = vsel %vm334, %v218, 0.0
        %458 = vadd.xlane.f32.xlu0 %v457
        %v459 = vpop.xlane.xlu0 %458
        %v460 = vsel %vm334, %v219, 0.0
        %461 = vadd.xlane.f32.xlu0 %v460
        %v462 = vpop.xlane.xlu0 %461
        %v463 = vsel %vm334, %v220, 0.0
        %464 = vadd.xlane.f32.xlu0 %v463
        %v465 = vpop.xlane.xlu0 %464
        %v466 = vsel %vm334, %v221, 0.0
        %467 = vadd.xlane.f32.xlu0 %v466
        %v468 = vpop.xlane.xlu0 %467
        %v477 = vperm.slane %v447, %v368
        %v478 = vperm.slane %v450, %v370
        %v479 = vsel %vm372, %v478, %v477
        %v480 = vperm.slane %v453, %v368
        %v481 = vperm.slane %v456, %v370
        %v482 = vsel %vm372, %v481, %v480
        %v483 = vperm.slane %v459, %v368
        %v484 = vperm.slane %v462, %v370
        %v485 = vsel %vm372, %v484, %v483
        %v486 = vperm.slane %v465, %v368
        %v487 = vperm.slane %v468, %v370
        %v488 = vsel %vm372, %v487, %v486
        %v489 = vsel %vm383, %v482, %v479
        %v490 = vsel %vm385, %v485, %v489
        %v491 = vsel %vm387, %v488, %v490
        %v493 = vsel %vm390, %v491, 0.0
        %494 = vadd.xlane.f32.xlu0 %v493
        %v495 = vpop.xlane.xlu0 %494
        %v496 = vmax.f32 %v302, -100.0
        %v497 = vmax.f32 %v303, -100.0
        %v498 = vmax.f32 %v304, -100.0
        %v499 = vmax.f32 %v305, -100.0
        %v500 = vmax.f32 %v306, -100.0
        %v501 = vmax.f32 %v307, -100.0
        %v502 = vmax.f32 %v308, -100.0
        %v503 = vmax.f32 %v309, -100.0
        %v504 = vsub.f32 %v222, %v294
        %v505 = vsub.f32 %v223, %v295
        %v506 = vsub.f32 %v224, %v296
        %v507 = vsub.f32 %v225, %v297
        %v508 = vsub.f32 %v226, %v298
        %v509 = vsub.f32 %v227, %v299
        %v510 = vsub.f32 %v228, %v300
        %v511 = vsub.f32 %v229, %v301
        %v512 = vmax.f32 %v504, -100.0
        %v513 = vmax.f32 %v505, -100.0
        %v514 = vmax.f32 %v506, -100.0
        %v515 = vmax.f32 %v507, -100.0
        %v516 = vmax.f32 %v508, -100.0
        %v517 = vmax.f32 %v509, -100.0
        %v518 = vmax.f32 %v510, -100.0
        %v519 = vmax.f32 %v511, -100.0
        %v520 = vmul.f32 %v214, %v496
        %v521 = vmul.f32 %v215, %v497
        %v522 = vmul.f32 %v216, %v498
        %v523 = vmul.f32 %v217, %v499
        %v524 = vmul.f32 %v218, %v500
        %v525 = vmul.f32 %v219, %v501
        %v526 = vmul.f32 %v220, %v502
        %v527 = vmul.f32 %v221, %v503
        %v528 = vsub.f32 1.0, %v214
        %v529 = vsub.f32 1.0, %v215
        %v530 = vsub.f32 1.0, %v216
        %v531 = vsub.f32 1.0, %v217
        %v532 = vsub.f32 1.0, %v218
        %v533 = vsub.f32 1.0, %v219
        %v534 = vsub.f32 1.0, %v220
        %v535 = vsub.f32 1.0, %v221
        %v536 = vmul.f32 %v528, %v512
        %v537 = vmul.f32 %v529, %v513
        %v538 = vmul.f32 %v530, %v514
        %v539 = vmul.f32 %v531, %v515
        %v540 = vmul.f32 %v532, %v516
        %v541 = vmul.f32 %v533, %v517
        %v542 = vmul.f32 %v534, %v518
        %v543 = vmul.f32 %v535, %v519
        %v544 = vadd.f32 %v520, %v536
        %v545 = vadd.f32 %v521, %v537
        %v546 = vadd.f32 %v522, %v538
        %v547 = vadd.f32 %v523, %v539
        %v548 = vadd.f32 %v524, %v540
        %v549 = vadd.f32 %v525, %v541
        %v550 = vadd.f32 %v526, %v542
        %v551 = vadd.f32 %v527, %v543
        %v552 = vsub.f32 0.0, %v544
        %v553 = vsub.f32 0.0, %v545
        %v554 = vsub.f32 0.0, %v546
        %v555 = vsub.f32 0.0, %v547
        %v556 = vsub.f32 0.0, %v548
        %v557 = vsub.f32 0.0, %v549
        %v558 = vsub.f32 0.0, %v550
        %v559 = vsub.f32 0.0, %v551
        %vm560 = vcmp.gt.f32.partialorder %v214, 0.5
        %vm561 = vcmp.gt.f32.partialorder %v215, 0.5
        %vm562 = vcmp.gt.f32.partialorder %v216, 0.5
        %vm563 = vcmp.gt.f32.partialorder %v217, 0.5
        %vm564 = vcmp.gt.f32.partialorder %v218, 0.5
        %vm565 = vcmp.gt.f32.partialorder %v219, 0.5
        %vm566 = vcmp.gt.f32.partialorder %v220, 0.5
        %vm567 = vcmp.gt.f32.partialorder %v221, 0.5
        %v568 = vsub.f32 1.0, %v311
        %v569 = vsub.f32 1.0, %v313
        %v570 = vsub.f32 1.0, %v315
        %v571 = vsub.f32 1.0, %v317
        %v572 = vsub.f32 1.0, %v319
        %v573 = vsub.f32 1.0, %v321
        %v574 = vsub.f32 1.0, %v323
        %v575 = vsub.f32 1.0, %v325
        %v576 = vsel %vm560, %v311, %v568
        %v577 = vsel %vm561, %v313, %v569
        %v578 = vsel %vm562, %v315, %v570
        %v579 = vsel %vm563, %v317, %v571
        %v580 = vsel %vm564, %v319, %v572
        %v581 = vsel %vm565, %v321, %v573
        %v582 = vsel %vm566, %v323, %v574
        %v583 = vsel %vm567, %v325, %v575
        %v584 = vsub.f32 1.0, %v576
        %v585 = vsub.f32 1.0, %v577
        %v586 = vsub.f32 1.0, %v578
        %v587 = vsub.f32 1.0, %v579
        %v588 = vsub.f32 1.0, %v580
        %v589 = vsub.f32 1.0, %v581
        %v590 = vsub.f32 1.0, %v582
        %v591 = vsub.f32 1.0, %v583
        %v592 = vmul.f32 %v584, %v584
        %v593 = vmul.f32 %v585, %v585
        %v594 = vmul.f32 %v586, %v586
        %v595 = vmul.f32 %v587, %v587
        %v596 = vmul.f32 %v588, %v588
        %v597 = vmul.f32 %v589, %v589
        %v598 = vmul.f32 %v590, %v590
        %v599 = vmul.f32 %v591, %v591
        %v600 = vmul.f32 %v592, %v552
        %v601 = vmul.f32 %v593, %v553
        %v602 = vmul.f32 %v594, %v554
        %v603 = vmul.f32 %v595, %v555
        %v604 = vmul.f32 %v596, %v556
        %v605 = vmul.f32 %v597, %v557
        %v606 = vmul.f32 %v598, %v558
        %v607 = vmul.f32 %v599, %v559
        %v608 = vsel %vm334, %v600, 0.0
        %609 = vadd.xlane.f32.xlu0 %v608
        %v610 = vpop.xlane.xlu0 %609
        %v611 = vsel %vm334, %v601, 0.0
        %612 = vadd.xlane.f32.xlu0 %v611
        %v613 = vpop.xlane.xlu0 %612
        %v614 = vsel %vm334, %v602, 0.0
        %615 = vadd.xlane.f32.xlu0 %v614
        %v616 = vpop.xlane.xlu0 %615
        %v617 = vsel %vm334, %v603, 0.0
        %618 = vadd.xlane.f32.xlu0 %v617
        %v619 = vpop.xlane.xlu0 %618
        %v620 = vsel %vm334, %v604, 0.0
        %621 = vadd.xlane.f32.xlu0 %v620
        %v622 = vpop.xlane.xlu0 %621
        %v623 = vsel %vm334, %v605, 0.0
        %624 = vadd.xlane.f32.xlu0 %v623
        %v625 = vpop.xlane.xlu0 %624
        %v626 = vsel %vm334, %v606, 0.0
        %627 = vadd.xlane.f32.xlu0 %v626
        %v628 = vpop.xlane.xlu0 %627
        %v629 = vsel %vm334, %v607, 0.0
        %630 = vadd.xlane.f32.xlu0 %v629
        %v631 = vpop.xlane.xlu0 %630
        %v640 = vperm.slane %v610, %v368
        %v641 = vperm.slane %v613, %v370
        %v642 = vsel %vm372, %v641, %v640
        %v643 = vperm.slane %v616, %v368
        %v644 = vperm.slane %v619, %v370
        %v645 = vsel %vm372, %v644, %v643
        %v646 = vperm.slane %v622, %v368
        %v647 = vperm.slane %v625, %v370
        %v648 = vsel %vm372, %v647, %v646
        %v649 = vperm.slane %v628, %v368
        %v650 = vperm.slane %v631, %v370
        %v651 = vsel %vm372, %v650, %v649
        %v652 = vsel %vm383, %v645, %v642
        %v653 = vsel %vm385, %v648, %v652
        %v654 = vsel %vm387, %v651, %v653
        %v656 = vsel %vm390, %v654, 0.0
        %657 = vadd.xlane.f32.xlu0 %v656
        %v658 = vpop.xlane.xlu0 %657
        %v659 = vsel %vm560, 1, 0
        %v660 = vsel %vm561, 1, 0
        %v661 = vsel %vm562, 1, 0
        %v662 = vsel %vm563, 1, 0
        %v663 = vsel %vm564, 1, 0
        %v664 = vsel %vm565, 1, 0
        %v665 = vsel %vm566, 1, 0
        %v666 = vsel %vm567, 1, 0
        %v667 = vcvt.s32.f32 %v659
        %v668 = vcvt.s32.f32 %v660
        %v669 = vcvt.s32.f32 %v661
        %v670 = vcvt.s32.f32 %v662
        %v671 = vcvt.s32.f32 %v663
        %v672 = vcvt.s32.f32 %v664
        %v673 = vcvt.s32.f32 %v665
        %v674 = vcvt.s32.f32 %v666
        %vm675 = vcmask 146432
        %676 = vst.msk [vmem:[#allocation2] sm:$0xff] %vm675, 0.0
        %677 = vst.msk [vmem:[#allocation2 + $0x8] sm:$0xff] %vm675, 0.0
        %vm678 = vcmask 140288
        %679 = vst.msk [vmem:[#allocation2 + $0x10] sm:$0x3] %vm678, 0.0
        %680 = vst.msk [vmem:[#allocation2 + $0x18] sm:$0xff] %vm675, 0.0
        %681 = vst.msk [vmem:[#allocation2 + $0x20] sm:$0xff] %vm675, 0.0
        %682 = vst.msk [vmem:[#allocation2 + $0x28] sm:$0x3] %vm678, 0.0
        %683 = vst.msk [vmem:[#allocation2 + $0x30] sm:$0xff] %vm675, 0.0
        %684 = vst.msk [vmem:[#allocation2 + $0x38] sm:$0xff] %vm675, 0.0
        %685 = vst.msk [vmem:[#allocation2 + $0x40] sm:$0x3] %vm678, 0.0
        %686 = vst.msk [vmem:[#allocation2 + $0x48] sm:$0xff] %vm675, 0.0
        %687 = vst.msk [vmem:[#allocation2 + $0x50] sm:$0xff] %vm675, 0.0
        %688 = vst.msk [vmem:[#allocation2 + $0x58] sm:$0x3] %vm678, 0.0
        %697 = vrot.lane.b32.xlu0 %v667, 1
        %v698 = vpop.permute.xlu0 %697
        %699 = vrot.lane.b32.xlu0 %v668, 1
        %v700 = vpop.permute.xlu0 %699
        %701 = vrot.lane.b32.xlu0 %v669, 1
        %v702 = vpop.permute.xlu0 %701
        %703 = vrot.lane.b32.xlu0 %v670, 1
        %v704 = vpop.permute.xlu0 %703
        %705 = vrot.lane.b32.xlu0 %v671, 1
        %v706 = vpop.permute.xlu0 %705
        %707 = vrot.lane.b32.xlu0 %v672, 1
        %v708 = vpop.permute.xlu0 %707
        %709 = vrot.lane.b32.xlu0 %v673, 1
        %v710 = vpop.permute.xlu0 %709
        %711 = vrot.lane.b32.xlu0 %v674, 1
        %v712 = vpop.permute.xlu0 %711
        %vm721 = vcmask 138248
        %722 = vst.msk [vmem:[#allocation2 + $0x1] sm:$0xff] %vm721, %v698
        %723 = vst.msk [vmem:[#allocation2 + $0x9] sm:$0xff] %vm721, %v700
        %724 = vst.msk [vmem:[#allocation2 + $0x19] sm:$0xff] %vm721, %v702
        %725 = vst.msk [vmem:[#allocation2 + $0x21] sm:$0xff] %vm721, %v704
        %726 = vst.msk [vmem:[#allocation2 + $0x31] sm:$0xff] %vm721, %v706
        %727 = vst.msk [vmem:[#allocation2 + $0x39] sm:$0xff] %vm721, %v708
        %728 = vst.msk [vmem:[#allocation2 + $0x49] sm:$0xff] %vm721, %v710
        %729 = vst.msk [vmem:[#allocation2 + $0x51] sm:$0xff] %vm721, %v712
        %v730 = vld [vmem:[#allocation2] sm:$0xff]
        %v731 = vld [vmem:[#allocation2 + $0x8] sm:$0xff]
        %v732 = vld [vmem:[#allocation2 + $0x18] sm:$0xff]
        %v733 = vld [vmem:[#allocation2 + $0x20] sm:$0xff]
        %v734 = vld [vmem:[#allocation2 + $0x30] sm:$0xff]
        %v735 = vld [vmem:[#allocation2 + $0x38] sm:$0xff]
        %v736 = vld [vmem:[#allocation2 + $0x48] sm:$0xff]
        %v737 = vld [vmem:[#allocation2 + $0x50] sm:$0xff]
        %746 = vrot.lane.b32.xlu0 %v730, 127
        %v747 = vpop.permute.xlu0 %746
        %748 = vrot.lane.b32.xlu0 %v731, 127
        %v749 = vpop.permute.xlu0 %748
        %750 = vrot.lane.b32.xlu0 %v732, 127
        %v751 = vpop.permute.xlu0 %750
        %752 = vrot.lane.b32.xlu0 %v733, 127
        %v753 = vpop.permute.xlu0 %752
        %754 = vrot.lane.b32.xlu0 %v734, 127
        %v755 = vpop.permute.xlu0 %754
        %756 = vrot.lane.b32.xlu0 %v735, 127
        %v757 = vpop.permute.xlu0 %756
        %758 = vrot.lane.b32.xlu0 %v736, 127
        %v759 = vpop.permute.xlu0 %758
        %760 = vrot.lane.b32.xlu0 %v737, 127
        %v761 = vpop.permute.xlu0 %760
        %v770 = vadd.f32 %v730, %v747
        %v771 = vadd.f32 %v731, %v749
        %v772 = vadd.f32 %v732, %v751
        %v773 = vadd.f32 %v733, %v753
        %v774 = vadd.f32 %v734, %v755
        %v775 = vadd.f32 %v735, %v757
        %v776 = vadd.f32 %v736, %v759
        %v777 = vadd.f32 %v737, %v761
        %778 = vrot.lane.b32.xlu0 %v730, 126
        %v779 = vpop.permute.xlu0 %778
        %780 = vrot.lane.b32.xlu0 %v731, 126
        %v781 = vpop.permute.xlu0 %780
        %782 = vrot.lane.b32.xlu0 %v732, 126
        %v783 = vpop.permute.xlu0 %782
        %784 = vrot.lane.b32.xlu0 %v733, 126
        %v785 = vpop.permute.xlu0 %784
        %786 = vrot.lane.b32.xlu0 %v734, 126
        %v787 = vpop.permute.xlu0 %786
        %788 = vrot.lane.b32.xlu0 %v735, 126
        %v789 = vpop.permute.xlu0 %788
        %790 = vrot.lane.b32.xlu0 %v736, 126
        %v791 = vpop.permute.xlu0 %790
        %792 = vrot.lane.b32.xlu0 %v737, 126
        %v793 = vpop.permute.xlu0 %792
        %v802 = vadd.f32 %v770, %v779
        %v803 = vadd.f32 %v771, %v781
        %v804 = vadd.f32 %v772, %v783
        %v805 = vadd.f32 %v773, %v785
        %v806 = vadd.f32 %v774, %v787
        %v807 = vadd.f32 %v775, %v789
        %v808 = vadd.f32 %v776, %v791
        %v809 = vadd.f32 %v777, %v793
        %v810 = vld [vmem:[#allocation2 + $0x1] sm:$0xff]
        %v811 = vld [vmem:[#allocation2 + $0x9] sm:$0xff]
        %v812 = vld [vmem:[#allocation2 + $0x19] sm:$0xff]
        %v813 = vld [vmem:[#allocation2 + $0x21] sm:$0xff]
        %v814 = vld [vmem:[#allocation2 + $0x31] sm:$0xff]
        %v815 = vld [vmem:[#allocation2 + $0x39] sm:$0xff]
        %v816 = vld [vmem:[#allocation2 + $0x49] sm:$0xff]
        %v817 = vld [vmem:[#allocation2 + $0x51] sm:$0xff]
        %v818 = vadd.f32 %v802, %v810
        %v819 = vadd.f32 %v803, %v811
        %v820 = vadd.f32 %v804, %v812
        %v821 = vadd.f32 %v805, %v813
        %v822 = vadd.f32 %v806, %v814
        %v823 = vadd.f32 %v807, %v815
        %v824 = vadd.f32 %v808, %v816
        %v825 = vadd.f32 %v809, %v817
        %834 = vrot.lane.b32.xlu0 %v810, 127
        %v835 = vpop.permute.xlu0 %834
        %836 = vrot.lane.b32.xlu0 %v811, 127
        %v837 = vpop.permute.xlu0 %836
        %838 = vrot.lane.b32.xlu0 %v812, 127
        %v839 = vpop.permute.xlu0 %838
        %840 = vrot.lane.b32.xlu0 %v813, 127
        %v841 = vpop.permute.xlu0 %840
        %842 = vrot.lane.b32.xlu0 %v814, 127
        %v843 = vpop.permute.xlu0 %842
        %844 = vrot.lane.b32.xlu0 %v815, 127
        %v845 = vpop.permute.xlu0 %844
        %846 = vrot.lane.b32.xlu0 %v816, 127
        %v847 = vpop.permute.xlu0 %846
        %848 = vrot.lane.b32.xlu0 %v817, 127
        %v849 = vpop.permute.xlu0 %848
        %v858 = vadd.f32 %v818, %v835
        %v859 = vadd.f32 %v819, %v837
        %v860 = vadd.f32 %v820, %v839
        %v861 = vadd.f32 %v821, %v841
        %v862 = vadd.f32 %v822, %v843
        %v863 = vadd.f32 %v823, %v845
        %v864 = vadd.f32 %v824, %v847
        %v865 = vadd.f32 %v825, %v849
        %866 = vrot.lane.b32.xlu0 %v810, 126
        %v867 = vpop.permute.xlu0 %866
        %868 = vrot.lane.b32.xlu0 %v811, 126
        %v869 = vpop.permute.xlu0 %868
        %870 = vrot.lane.b32.xlu0 %v812, 126
        %v871 = vpop.permute.xlu0 %870
        %872 = vrot.lane.b32.xlu0 %v813, 126
        %v873 = vpop.permute.xlu0 %872
        %874 = vrot.lane.b32.xlu0 %v814, 126
        %v875 = vpop.permute.xlu0 %874
        %876 = vrot.lane.b32.xlu0 %v815, 126
        %v877 = vpop.permute.xlu0 %876
        %878 = vrot.lane.b32.xlu0 %v816, 126
        %v879 = vpop.permute.xlu0 %878
        %880 = vrot.lane.b32.xlu0 %v817, 126
        %v881 = vpop.permute.xlu0 %880
        %v890 = vadd.f32 %v858, %v867
        %v891 = vadd.f32 %v859, %v869
        %v892 = vadd.f32 %v860, %v871
        %v893 = vadd.f32 %v861, %v873
        %v894 = vadd.f32 %v862, %v875
        %v895 = vadd.f32 %v863, %v877
        %v896 = vadd.f32 %v864, %v879
        %v897 = vadd.f32 %v865, %v881
        %v898 = vld [vmem:[#allocation2 + $0x2] sm:$0xff]
        %v899 = vld [vmem:[#allocation2 + $0xa] sm:$0xff]
        %v900 = vld [vmem:[#allocation2 + $0x1a] sm:$0xff]
        %v901 = vld [vmem:[#allocation2 + $0x22] sm:$0xff]
        %v902 = vld [vmem:[#allocation2 + $0x32] sm:$0xff]
        %v903 = vld [vmem:[#allocation2 + $0x3a] sm:$0xff]
        %v904 = vld [vmem:[#allocation2 + $0x4a] sm:$0xff]
        %v905 = vld [vmem:[#allocation2 + $0x52] sm:$0xff]
        %v906 = vadd.f32 %v890, %v898
        %v907 = vadd.f32 %v891, %v899
        %v908 = vadd.f32 %v892, %v900
        %v909 = vadd.f32 %v893, %v901
        %v910 = vadd.f32 %v894, %v902
        %v911 = vadd.f32 %v895, %v903
        %v912 = vadd.f32 %v896, %v904
        %v913 = vadd.f32 %v897, %v905
        %922 = vrot.lane.b32.xlu0 %v898, 127
        %v923 = vpop.permute.xlu0 %922
        %924 = vrot.lane.b32.xlu0 %v899, 127
        %v925 = vpop.permute.xlu0 %924
        %926 = vrot.lane.b32.xlu0 %v900, 127
        %v927 = vpop.permute.xlu0 %926
        %928 = vrot.lane.b32.xlu0 %v901, 127
        %v929 = vpop.permute.xlu0 %928
        %930 = vrot.lane.b32.xlu0 %v902, 127
        %v931 = vpop.permute.xlu0 %930
        %932 = vrot.lane.b32.xlu0 %v903, 127
        %v933 = vpop.permute.xlu0 %932
        %934 = vrot.lane.b32.xlu0 %v904, 127
        %v935 = vpop.permute.xlu0 %934
        %936 = vrot.lane.b32.xlu0 %v905, 127
        %v937 = vpop.permute.xlu0 %936
        %v946 = vadd.f32 %v906, %v923
        %v947 = vadd.f32 %v907, %v925
        %v948 = vadd.f32 %v908, %v927
        %v949 = vadd.f32 %v909, %v929
        %v950 = vadd.f32 %v910, %v931
        %v951 = vadd.f32 %v911, %v933
        %v952 = vadd.f32 %v912, %v935
        %v953 = vadd.f32 %v913, %v937
        %954 = vrot.lane.b32.xlu0 %v898, 126
        %v955 = vpop.permute.xlu0 %954
        %956 = vrot.lane.b32.xlu0 %v899, 126
        %v957 = vpop.permute.xlu0 %956
        %958 = vrot.lane.b32.xlu0 %v900, 126
        %v959 = vpop.permute.xlu0 %958
        %960 = vrot.lane.b32.xlu0 %v901, 126
        %v961 = vpop.permute.xlu0 %960
        %962 = vrot.lane.b32.xlu0 %v902, 126
        %v963 = vpop.permute.xlu0 %962
        %964 = vrot.lane.b32.xlu0 %v903, 126
        %v965 = vpop.permute.xlu0 %964
        %966 = vrot.lane.b32.xlu0 %v904, 126
        %v967 = vpop.permute.xlu0 %966
        %968 = vrot.lane.b32.xlu0 %v905, 126
        %v969 = vpop.permute.xlu0 %968
        %v978 = vadd.f32 %v946, %v955
        %v979 = vadd.f32 %v947, %v957
        %v980 = vadd.f32 %v948, %v959
        %v981 = vadd.f32 %v949, %v961
        %v982 = vadd.f32 %v950, %v963
        %v983 = vadd.f32 %v951, %v965
        %v984 = vadd.f32 %v952, %v967
        %v985 = vadd.f32 %v953, %v969
        %vm986 = vcmp.gt.f32.partialorder %v978, 0.5
        %vm987 = vcmp.gt.f32.partialorder %v979, 0.5
        %vm988 = vcmp.gt.f32.partialorder %v980, 0.5
        %vm989 = vcmp.gt.f32.partialorder %v981, 0.5
        %vm990 = vcmp.gt.f32.partialorder %v982, 0.5
        %vm991 = vcmp.gt.f32.partialorder %v983, 0.5
        %vm992 = vcmp.gt.f32.partialorder %v984, 0.5
        %vm993 = vcmp.gt.f32.partialorder %v985, 0.5
        %vm994 = vcmp.lt.f32.partialorder %v978, 8.5
        %vm995 = vcmp.lt.f32.partialorder %v979, 8.5
        %vm996 = vcmp.lt.f32.partialorder %v980, 8.5
        %vm997 = vcmp.lt.f32.partialorder %v981, 8.5
        %vm998 = vcmp.lt.f32.partialorder %v982, 8.5
        %vm999 = vcmp.lt.f32.partialorder %v983, 8.5
        %vm1000 = vcmp.lt.f32.partialorder %v984, 8.5
        %vm1001 = vcmp.lt.f32.partialorder %v985, 8.5
        %vm1002 = vmand %vm986, %vm994
        %vm1003 = vmand %vm987, %vm995
        %vm1004 = vmand %vm988, %vm996
        %vm1005 = vmand %vm989, %vm997
        %vm1006 = vmand %vm990, %vm998
        %vm1007 = vmand %vm991, %vm999
        %vm1008 = vmand %vm992, %vm1000
        %vm1009 = vmand %vm993, %vm1001
        %v1010 = vsel %vm1002, 1, 0
        %v1011 = vsel %vm1003, 1, 0
        %v1012 = vsel %vm1004, 1, 0
        %v1013 = vsel %vm1005, 1, 0
        %v1014 = vsel %vm1006, 1, 0
        %v1015 = vsel %vm1007, 1, 0
        %v1016 = vsel %vm1008, 1, 0
        %v1017 = vsel %vm1009, 1, 0
        %v1018 = vcvt.s32.f32 %v1010
        %v1019 = vcvt.s32.f32 %v1011
        %v1020 = vcvt.s32.f32 %v1012
        %v1021 = vcvt.s32.f32 %v1013
        %v1022 = vcvt.s32.f32 %v1014
        %v1023 = vcvt.s32.f32 %v1015
        %v1024 = vcvt.s32.f32 %v1016
        %v1025 = vcvt.s32.f32 %v1017
        %v1026 = vmul.f32 %v206, %v1018
        %v1027 = vmul.f32 %v207, %v1019
        %v1028 = vmul.f32 %v208, %v1020
        %v1029 = vmul.f32 %v209, %v1021
        %v1030 = vmul.f32 %v210, %v1022
        %v1031 = vmul.f32 %v211, %v1023
        %v1032 = vmul.f32 %v212, %v1024
        %v1033 = vmul.f32 %v213, %v1025
        %v1034 = vmul.f32 %v214, %v1018
        %v1035 = vmul.f32 %v215, %v1019
        %v1036 = vmul.f32 %v216, %v1020
        %v1037 = vmul.f32 %v217, %v1021
        %v1038 = vmul.f32 %v218, %v1022
        %v1039 = vmul.f32 %v219, %v1023
        %v1040 = vmul.f32 %v220, %v1024
        %v1041 = vmul.f32 %v221, %v1025
        %v1042 = vmax.f32 %v1026, 0.0
        %v1043 = vmax.f32 %v1027, 0.0
        %v1044 = vmax.f32 %v1028, 0.0
        %v1045 = vmax.f32 %v1029, 0.0
        %v1046 = vmax.f32 %v1030, 0.0
        %v1047 = vmax.f32 %v1031, 0.0
        %v1048 = vmax.f32 %v1032, 0.0
        %v1049 = vmax.f32 %v1033, 0.0
        %v1050 = vmul.f32 %v1026, %v1034
        %v1051 = vmul.f32 %v1027, %v1035
        %v1052 = vmul.f32 %v1028, %v1036
        %v1053 = vmul.f32 %v1029, %v1037
        %v1054 = vmul.f32 %v1030, %v1038
        %v1055 = vmul.f32 %v1031, %v1039
        %v1056 = vmul.f32 %v1032, %v1040
        %v1057 = vmul.f32 %v1033, %v1041
        %v1058 = vsub.f32 %v1042, %v1050
        %v1059 = vsub.f32 %v1043, %v1051
        %v1060 = vsub.f32 %v1044, %v1052
        %v1061 = vsub.f32 %v1045, %v1053
        %v1062 = vsub.f32 %v1046, %v1054
        %v1063 = vsub.f32 %v1047, %v1055
        %v1064 = vsub.f32 %v1048, %v1056
        %v1065 = vsub.f32 %v1049, %v1057
        %v1066 = vand.u32 2147483647, %v1026
        %v1067 = vand.u32 2147483647, %v1027
        %v1068 = vand.u32 2147483647, %v1028
        %v1069 = vand.u32 2147483647, %v1029
        %v1070 = vand.u32 2147483647, %v1030
        %v1071 = vand.u32 2147483647, %v1031
        %v1072 = vand.u32 2147483647, %v1032
        %v1073 = vand.u32 2147483647, %v1033
        %v1074 = vsub.f32 0.0, %v1066
        %v1075 = vsub.f32 0.0, %v1067
        %v1076 = vsub.f32 0.0, %v1068
        %v1077 = vsub.f32 0.0, %v1069
        %v1078 = vsub.f32 0.0, %v1070
        %v1079 = vsub.f32 0.0, %v1071
        %v1080 = vsub.f32 0.0, %v1072
        %v1081 = vsub.f32 0.0, %v1073
        %v1082 = vmul.f32 %v1074, 1.442695
        %v1083 = vpow.pop %v1082
        %v1084 = vmul.f32 %v1075, 1.442695
        %v1085 = vpow.pop %v1084
        %v1086 = vmul.f32 %v1076, 1.442695
        %v1087 = vpow.pop %v1086
        %v1088 = vmul.f32 %v1077, 1.442695
        %v1089 = vpow.pop %v1088
        %v1090 = vmul.f32 %v1078, 1.442695
        %v1091 = vpow.pop %v1090
        %v1092 = vmul.f32 %v1079, 1.442695
        %v1093 = vpow.pop %v1092
        %v1094 = vmul.f32 %v1080, 1.442695
        %v1095 = vpow.pop %v1094
        %v1096 = vmul.f32 %v1081, 1.442695
        %v1097 = vpow.pop %v1096
        %v1098 = vadd.f32 %v1083, 1.0
        %v1099 = vadd.f32 %v1085, 1.0
        %v1100 = vadd.f32 %v1087, 1.0
        %v1101 = vadd.f32 %v1089, 1.0
        %v1102 = vadd.f32 %v1091, 1.0
        %v1103 = vadd.f32 %v1093, 1.0
        %v1104 = vadd.f32 %v1095, 1.0
        %v1105 = vadd.f32 %v1097, 1.0
        %v1106 = vlog2.pop %v1098
        %v1107 = vmul.f32 %v1106, 0.6931472
        %v1108 = vlog2.pop %v1099
        %v1109 = vmul.f32 %v1108, 0.6931472
        %v1110 = vlog2.pop %v1100
        %v1111 = vmul.f32 %v1110, 0.6931472
        %v1112 = vlog2.pop %v1101
        %v1113 = vmul.f32 %v1112, 0.6931472
        %v1114 = vlog2.pop %v1102
        %v1115 = vmul.f32 %v1114, 0.6931472
        %v1116 = vlog2.pop %v1103
        %v1117 = vmul.f32 %v1116, 0.6931472
        %v1118 = vlog2.pop %v1104
        %v1119 = vmul.f32 %v1118, 0.6931472
        %v1120 = vlog2.pop %v1105
        %v1121 = vmul.f32 %v1120, 0.6931472
        %v1122 = vadd.f32 %v1058, %v1107
        %v1123 = vadd.f32 %v1059, %v1109
        %v1124 = vadd.f32 %v1060, %v1111
        %v1125 = vadd.f32 %v1061, %v1113
        %v1126 = vadd.f32 %v1062, %v1115
        %v1127 = vadd.f32 %v1063, %v1117
        %v1128 = vadd.f32 %v1064, %v1119
        %v1129 = vadd.f32 %v1065, %v1121
        %v1130 = vsel %vm334, %v1122, 0.0
        %1131 = vadd.xlane.f32.xlu0 %v1130
        %v1132 = vpop.xlane.xlu0 %1131
        %v1133 = vsel %vm334, %v1123, 0.0
        %1134 = vadd.xlane.f32.xlu0 %v1133
        %v1135 = vpop.xlane.xlu0 %1134
        %v1136 = vsel %vm334, %v1124, 0.0
        %1137 = vadd.xlane.f32.xlu0 %v1136
        %v1138 = vpop.xlane.xlu0 %1137
        %v1139 = vsel %vm334, %v1125, 0.0
        %1140 = vadd.xlane.f32.xlu0 %v1139
        %v1141 = vpop.xlane.xlu0 %1140
        %v1142 = vsel %vm334, %v1126, 0.0
        %1143 = vadd.xlane.f32.xlu0 %v1142
        %v1144 = vpop.xlane.xlu0 %1143
        %v1145 = vsel %vm334, %v1127, 0.0
        %1146 = vadd.xlane.f32.xlu0 %v1145
        %v1147 = vpop.xlane.xlu0 %1146
        %v1148 = vsel %vm334, %v1128, 0.0
        %1149 = vadd.xlane.f32.xlu0 %v1148
        %v1150 = vpop.xlane.xlu0 %1149
        %v1151 = vsel %vm334, %v1129, 0.0
        %1152 = vadd.xlane.f32.xlu0 %v1151
        %v1153 = vpop.xlane.xlu0 %1152
        %v1162 = vperm.slane %v1132, %v368
        %v1163 = vperm.slane %v1135, %v370
        %v1164 = vsel %vm372, %v1163, %v1162
        %v1165 = vperm.slane %v1138, %v368
        %v1166 = vperm.slane %v1141, %v370
        %v1167 = vsel %vm372, %v1166, %v1165
        %v1168 = vperm.slane %v1144, %v368
        %v1169 = vperm.slane %v1147, %v370
        %v1170 = vsel %vm372, %v1169, %v1168
        %v1171 = vperm.slane %v1150, %v368
        %v1172 = vperm.slane %v1153, %v370
        %v1173 = vsel %vm372, %v1172, %v1171
        %v1174 = vsel %vm383, %v1167, %v1164
        %v1175 = vsel %vm385, %v1170, %v1174
        %v1176 = vsel %vm387, %v1173, %v1175
        %v1178 = vsel %vm390, %v1176, 0.0
        %1179 = vadd.xlane.f32.xlu0 %v1178
        %v1180 = vpop.xlane.xlu0 %1179
        %vm1181 = vcmp.eq.s32.totalorder %v368, 0
        %v1182 = vsel %vm1181, %v393, 0.0
        %vm1183 = vcmp.eq.s32.totalorder %v368, 1
        %v1184 = vsel %vm1183, %v444, 0.0
        %v1185 = vadd.f32 %v1182, %v1184
        %vm1186 = vcmp.eq.s32.totalorder %v368, 2
        %v1187 = vsel %vm1186, %v495, 0.0
        %v1188 = vadd.f32 %v1185, %v1187
        %vm1189 = vcmp.eq.s32.totalorder %v368, 3
        %v1190 = vsel %vm1189, %v658, 0.0
        %v1191 = vadd.f32 %v1188, %v1190
        %vm1192 = vcmp.eq.s32.totalorder %v368, 4
        %v1193 = vsel %vm1192, %v1180, 0.0
        %v1194 = vadd.f32 %v1191, %v1193
        %1195 = vst [vmem:[%s205] sm:$0xf] %v1194
        %s1196 = sand.u32 %s82, 1
        %s1197 = scalar_lea.sflag [#allocation5], %s1196
        %s1198 = sand.u32 %s82, 1
        %s1199 = smul.addr %s1198, 4
        %s1200 = scalar_lea.vmem [#allocation8], %s1199
        // Predicated region
        $region37: #{tpu_custom_call.1} parent=27 // pred_check
          %p1201 = pneg %p92
        $region38: #{tpu_custom_call.1} parent=27 // pred_check_branch
          %1203 = sbr.rel (%p1201) target = $region40
        $region39: #{tpu_custom_call.1} parent=27 // pred_region
          %1205 = vsyncadd %s1197, 0
          %s1206 = smul.addr %s22, 4
          %s1207 = scalar_lea.hbm %s2, %s1206
          %s1209 = sshll.u32 %s1200, 4
          %s1210 = int_to_ptr.vmem [resolvable:$true] %s1209
          %s1211 = sshll.u32 %s1207, 4
          %s1212 = int_to_ptr.hbm [resolvable:$true] %s1211
          %1214 = dma.vmem_to_hbm [thread:$0]  %s1210, 64, %s1212, %s1197
        $region40: #{tpu_custom_call.1} parent=27 // pred_fallthru
          _
      $region28: #{tpu_custom_call.1} parent=5 // pred_fallthru
        _
      %p1215 = scmp.le.s32.totalorder 2, %s17
      // Predicated region
      $region41: #{tpu_custom_call.1} parent=5 // pred_check
        %p1216 = pneg %p1215
      $region42: #{tpu_custom_call.1} parent=5 // pred_check_branch
        %1218 = sbr.rel (%p1216) target = $region44
      $region43: #{tpu_custom_call.1} parent=5 // pred_region
        %s1219 = ssub.s32 %s17, 2
        // Predicated region
        $region45: #{tpu_custom_call.1} parent=43 // pred_check
          %p1220 = pneg %p98
        $region46: #{tpu_custom_call.1} parent=43 // pred_check_branch
          %1222 = sbr.rel (%p1220) target = $region48
        $region47: #{tpu_custom_call.1} parent=43 // pred_region
          %s1223 = sand.u32 %s83, 1
          %s1224 = scalar_lea.sflag [#allocation5], %s1223
          %s1225 = sand.u32 %s83, 1
          %s1226 = smul.addr %s1225, 4
          %s1227 = scalar_lea.vmem [#allocation8], %s1226
          %1229 = dma.done %s1224, 64
        $region48: #{tpu_custom_call.1} parent=43 // pred_fallthru
          _
      $region44: #{tpu_custom_call.1} parent=5 // pred_fallthru
        _
    $region6: #{tpu_custom_call.1} parent=1 // loop_footer
      %s21 = sadd.s32 1, %s17
    $region7: #{tpu_custom_call.1} parent=1 // loop_footer_branch
      %16 = sbr.rel target = $region3
    $region8: #{tpu_custom_call.1} parent=1 // loop_exit
      _
    %1230 = vsyncpa [#allocation4], 1
    %s1231 = scalar_lea.sflag [#allocation4], 1
    %1232 = vsyncpa %s1231, 1
    %1233 = vsyncpa [#allocation7], 1
    %s1234 = scalar_lea.sflag [#allocation7], 1
    %1235 = vsyncpa %s1234, 1
    %1236 = vsyncpa [#allocation5], 1
    %s1237 = scalar_lea.sflag [#allocation5], 1
    %1238 = vsyncpa %s1237, 1

</llo_original>
